<compile_context>
chip_gen: v5e
topology: v5e:2x2
jax: 0.10.0
libtpu: 0.0.40
codegen_flags: <defaults>
</compile_context>

<pallas_src>
import functools

import jax
import jax.numpy as jnp
from jax.experimental import pallas as pl
from jax.experimental.pallas import tpu as pltpu

LANE = 128


def _round_up(x, m):
    return ((x + m - 1) // m) * m


def _pick_tile(n_pad, cap):
    """Largest multiple of 128 that divides n_pad and is <= cap."""
    t = min(cap, n_pad)
    t = (t // LANE) * LANE
    while n_pad % t != 0:
        t -= LANE
    return t


# ----------------------------------------------------------------------------
# Kernel A (primary): fused 2-layer GCN with A_hat resident in VMEM.
#   H1 = relu(A @ (X  @ W1) + b1)
#   H2 = relu(A @ (H1 @ W2) + b2)
#   out = [H1 | H2]  (bf16, lane-dense 2*NHID slab)
# ----------------------------------------------------------------------------
def _fused_gcn_kernel(a_ref, x_ref, w1_ref, b1_ref, w2_ref, b2_ref, o_ref):
    a = a_ref[...]                                                   # bf16 [Np, Np]

    xw1 = jnp.dot(x_ref[...].astype(jnp.bfloat16),
                  w1_ref[...].astype(jnp.bfloat16),
                  preferred_element_type=jnp.float32).astype(jnp.bfloat16)
    h1 = jnp.maximum(jnp.dot(a, xw1, preferred_element_type=jnp.float32)
                     + b1_ref[...], 0.0)                             # f32 [Np, NHID]

    xw2 = jnp.dot(h1.astype(jnp.bfloat16),
                  w2_ref[...].astype(jnp.bfloat16),
                  preferred_element_type=jnp.float32).astype(jnp.bfloat16)
    h2 = jnp.maximum(jnp.dot(a, xw2, preferred_element_type=jnp.float32)
                     + b2_ref[...], 0.0)                             # f32 [Np, NHID]

    o_ref[...] = jnp.concatenate([h1, h2], axis=-1).astype(jnp.bfloat16)


def fused_two_layer_gcn(a_hat, x, w1, b1, w2, b2):
    n_pad = a_hat.shape[0]
    f = x.shape[1]
    nhid = w1.shape[1]
    cost = pl.CostEstimate(
        flops=2 * (2 * n_pad * n_pad * nhid + n_pad * f * nhid + n_pad * nhid * nhid),
        transcendentals=0,
        bytes_accessed=(n_pad * n_pad * 2                    # A_hat read once (bf16)
                        + n_pad * f * x.dtype.itemsize
                        + n_pad * 2 * nhid * 2))             # packed bf16 slab write
    return pl.pallas_call(
        _fused_gcn_kernel,
        out_shape=jax.ShapeDtypeStruct((n_pad, 2 * nhid), jnp.bfloat16),
        grid_spec=pltpu.PrefetchScalarGridSpec(
            num_scalar_prefetch=0,
            grid=(1,),
            in_specs=[pl.BlockSpec((n_pad, n_pad), lambda i: (0, 0)),
                      pl.BlockSpec((n_pad, f), lambda i: (0, 0)),
                      pl.BlockSpec((f, nhid), lambda i: (0, 0)),
                      pl.BlockSpec((1, nhid), lambda i: (0, 0)),
                      pl.BlockSpec((nhid, nhid), lambda i: (0, 0)),
                      pl.BlockSpec((1, nhid), lambda i: (0, 0))],
            out_specs=pl.BlockSpec((n_pad, 2 * nhid), lambda i: (0, 0))),
        compiler_params=pltpu.CompilerParams(
            dimension_semantics=("arbitrary",),
            vmem_limit_bytes=48 * 1024 * 1024),   # stays under v7x's 64 MiB per-TC VMEM
        cost_estimate=cost,
    )(a_hat, x, w1, b1.reshape(1, nhid), w2, b2.reshape(1, nhid))


# ----------------------------------------------------------------------------
# Kernel B (fallback, big graphs): tiled H = relu(A_hat @ (X @ W) + b)
# XW is folded into the k-loop (no separate XW kernel / HBM round trip).
# ----------------------------------------------------------------------------
def _propagate_kernel(a_ref, x_ref, w_ref, b_ref, o_ref, acc_ref):
    k = pl.program_id(1)

    @pl.when(k == 0)
    def _():
        acc_ref[...] = jnp.zeros_like(acc_ref)

    xw = jnp.dot(x_ref[...].astype(jnp.bfloat16),
                 w_ref[...].astype(jnp.bfloat16),
                 preferred_element_type=jnp.float32).astype(jnp.bfloat16)
    acc_ref[...] += jnp.dot(a_ref[...], xw, preferred_element_type=jnp.float32)

    @pl.when(k == pl.num_programs(1) - 1)
    def _():
        o_ref[...] = jnp.maximum(acc_ref[...] + b_ref[...], 0.0).astype(o_ref.dtype)


def gcn_propagate(a_hat, x, w, b, *, tm, tk):
    n_pad = a_hat.shape[0]
    f = x.shape[1]
    nhid = w.shape[1]
    cost = pl.CostEstimate(
        flops=2 * n_pad * n_pad * nhid + 2 * (n_pad // tm) * n_pad * f * nhid,
        transcendentals=0,
        bytes_accessed=(n_pad * n_pad * 2
                        + n_pad * f * x.dtype.itemsize
                        + n_pad * nhid * 2))
    return pl.pallas_call(
        _propagate_kernel,
        out_shape=jax.ShapeDtypeStruct((n_pad, nhid), jnp.bfloat16),
        grid_spec=pltpu.PrefetchScalarGridSpec(
            num_scalar_prefetch=0,
            grid=(n_pad // tm, n_pad // tk),
            in_specs=[pl.BlockSpec((tm, tk), lambda i, k: (i, k)),
                      pl.BlockSpec((tk, f), lambda i, k: (k, 0)),
                      pl.BlockSpec((f, nhid), lambda i, k: (0, 0)),
                      pl.BlockSpec((1, nhid), lambda i, k: (0, 0))],
            out_specs=pl.BlockSpec((tm, nhid), lambda i, k: (i, 0)),
            scratch_shapes=[pltpu.VMEM((tm, nhid), jnp.float32)]),
        compiler_params=pltpu.CompilerParams(
            dimension_semantics=("parallel", "arbitrary"),
            vmem_limit_bytes=48 * 1024 * 1024),
        cost_estimate=cost,
    )(a_hat, x, w, b.reshape(1, nhid))


# ----------------------------------------------------------------------------
# Kernel C: streaming graph head over node tiles of the packed bf16 slab.
# In-kernel one-hot from batch ids; max / sum / count accumulators in VMEM;
# Linear + log_softmax at the last tile.
# ----------------------------------------------------------------------------
def _head_kernel(num_graphs, h_ref, bid_ref, wl_ref, bl_ref, o_ref,
                 max_acc, sum_acc, cnt_acc):
    t = pl.program_id(0)

    @pl.when(t == 0)
    def _():
        max_acc[...] = jnp.full_like(max_acc, -1e30)
        sum_acc[...] = jnp.zeros_like(sum_acc)
        cnt_acc[...] = jnp.zeros_like(cnt_acc)

    tm = h_ref.shape[0]
    bid = bid_ref[...]                                               # [1, TM] int32
    gids = jax.lax.broadcasted_iota(jnp.int32, (num_graphs, tm), 0)  # [B, TM]
    mask = gids == bid                                               # [B, TM] bool

    # mean-pool accumulation on the MXU (bf16 one-hot @ bf16 features -> f32)
    onehot = mask.astype(jnp.bfloat16)
    sum_acc[...] += jnp.dot(onehot, h_ref[...], preferred_element_type=jnp.float32)
    cnt_acc[...] += jnp.sum(mask.astype(jnp.float32), axis=1, keepdims=True)

    # max-pool accumulation: vectorized masked max (no per-graph Python unroll)
    xt = h_ref[...].astype(jnp.float32)                              # [TM, D2]
    tile_max = jnp.max(jnp.where(mask[:, :, None], xt[None, :, :],
                                 jnp.float32(-1e30)), axis=1)        # [B, D2]
    max_acc[...] = jnp.maximum(max_acc[...], tile_max)

    @pl.when(t == pl.num_programs(0) - 1)
    def _():
        mean = sum_acc[...] / jnp.maximum(cnt_acc[...], 1.0)         # exact divide
        feat = jnp.concatenate([max_acc[...], mean], axis=-1)        # [B, 4*NHID]
        logits = jnp.dot(feat, wl_ref[...],
                         preferred_element_type=jnp.float32) + bl_ref[...]
        m = jnp.max(logits, axis=-1, keepdims=True)
        z = logits - m
        lse = jnp.log(jnp.sum(jnp.exp(z), axis=-1, keepdims=True))
        o_ref[...] = z - lse


def graph_head(h_packed, bid_row, w_lin, b_lin, num_graphs, *, tm):
    # TODO(synk): on v7x the head could add a leading size-2 grid axis to use both
    # TensorCores; single-core streaming reduction is used here.
    n_pad, d2 = h_packed.shape
    nclass = w_lin.shape[1]
    b = num_graphs
    return pl.pallas_call(
        functools.partial(_head_kernel, b),
        out_shape=jax.ShapeDtypeStruct((b, nclass), jnp.float32),
        grid_spec=pltpu.PrefetchScalarGridSpec(
            num_scalar_prefetch=0,
            grid=(n_pad // tm,),
            in_specs=[pl.BlockSpec((tm, d2), lambda t: (t, 0)),
                      pl.BlockSpec((1, tm), lambda t: (0, t)),
                      pl.BlockSpec((2 * d2, nclass), lambda t: (0, 0)),
                      pl.BlockSpec((1, nclass), lambda t: (0, 0))],
            out_specs=pl.BlockSpec((b, nclass), lambda t: (0, 0)),
            scratch_shapes=[pltpu.VMEM((b, d2), jnp.float32),
                            pltpu.VMEM((b, d2), jnp.float32),
                            pltpu.VMEM((b, 1), jnp.float32)]),
        compiler_params=pltpu.CompilerParams(dimension_semantics=("arbitrary",)),
    )(h_packed, bid_row, w_lin, b_lin.reshape(1, nclass))


# ----------------------------------------------------------------------------
# A_hat construction: D^-1/2 (A + I) D^-1/2 (PyG gcn_norm, add_self_loops=True),
# scattered directly into a single pre-padded bf16 buffer.
# ----------------------------------------------------------------------------
def build_a_hat_padded(edge_index, edge_weight, n, n_pad):
    src, dst = edge_index[0], edge_index[1]                   # edge j -> i is (src=j, dst=i)
    loops = jnp.arange(n, dtype=edge_index.dtype)
    src = jnp.concatenate([src, loops])
    dst = jnp.concatenate([dst, loops])
    w = jnp.concatenate([edge_weight.astype(jnp.float32), jnp.ones((n,), jnp.float32)])
    deg = jnp.zeros((n,), jnp.float32).at[dst].add(w)
    dinv = jnp.where(deg > 0, jax.lax.rsqrt(deg), 0.0)
    vals = (dinv[dst] * w * dinv[src]).astype(jnp.bfloat16)
    # TODO(synk): int8 (v5e/v6e) or fp8 (v7x) A_hat would halve the dominant HBM stream.
    return jnp.zeros((n_pad, n_pad), jnp.bfloat16).at[dst, src].add(vals)


# Exact f32 normalization used by the pure-JAX reference.
def gcn_norm_dense(edge_index, edge_weight, n):
    row, col = edge_index[0], edge_index[1]
    loops = jnp.arange(n, dtype=edge_index.dtype)
    row = jnp.concatenate([row, loops])
    col = jnp.concatenate([col, loops])
    w = jnp.concatenate([edge_weight, jnp.ones((n,), edge_weight.dtype)])
    a = jnp.zeros((n, n), jnp.float32).at[col, row].add(w)
    deg = a.sum(axis=1)
    dinv = jnp.where(deg > 0, 1.0 / jnp.sqrt(deg), 0.0)
    return dinv[:, None] * a * dinv[None, :]


# ----------------------------------------------------------------------------
# Full GraphGCN forward (res=True, nlayer=2, eval mode -> dropout is identity)
# ----------------------------------------------------------------------------
def graph_gcn_forward(params, x, edge_index, edge_weight, batch, num_graphs,
                      *, residency_max_nodes=2048):
    n = x.shape[0]
    if edge_weight is None:
        edge_weight = jnp.ones((edge_index.shape[1],), jnp.float32)

    # Pad only to a multiple of 128 (no 512 rounding) -- wasted A_hat bytes are quadratic.
    n_pad = _round_up(max(n, LANE), LANE)

    a_hat = build_a_hat_padded(edge_index, edge_weight, n, n_pad)    # bf16, single buffer
    x_p = jnp.pad(x, ((0, n_pad - n), (0, 0)))
    # Padded nodes: batch id == num_graphs -> excluded from both pools in the head.
    bid_row = jnp.pad(batch.astype(jnp.int32), (0, n_pad - n),
                      constant_values=num_graphs).reshape(1, n_pad)

    if n_pad <= residency_max_nodes:
        # A_hat resident in VMEM across both layers; one kernel, one packed slab.
        h_packed = fused_two_layer_gcn(a_hat, x_p, params["w1"], params["b1"],
                                       params["w2"], params["b2"])
    else:
        tm = tk = _pick_tile(n_pad, 1024)
        h1 = gcn_propagate(a_hat, x_p, params["w1"], params["b1"], tm=tm, tk=tk)
        h2 = gcn_propagate(a_hat, h1, params["w2"], params["b2"], tm=tm, tk=tk)
        h_packed = jnp.concatenate([h1, h2], axis=-1)                # bf16 [Np, 2*NHID]

    tm_head = _pick_tile(n_pad, 512)
    return graph_head(h_packed, bid_row, params["w_lin"], params["b_lin"],
                      num_graphs, tm=tm_head)


# ----------------------------------------------------------------------------
# Pure-JAX f32 reference (kernels use bf16 MXU inputs -> loose tolerance)
# ----------------------------------------------------------------------------
def reference_forward(params, x, edge_index, edge_weight, batch, num_graphs):
    n = x.shape[0]
    a_hat = gcn_norm_dense(edge_index, edge_weight, n)
    h1 = jnp.maximum(a_hat @ (x @ params["w1"]) + params["b1"], 0.0)
    h2 = jnp.maximum(a_hat @ (h1 @ params["w2"]) + params["b2"], 0.0)
    xc = jnp.concatenate([h1, h2], axis=-1)
    onehot = (batch[None, :] == jnp.arange(num_graphs, dtype=batch.dtype)[:, None]).astype(jnp.float32)
    counts = onehot.sum(axis=1, keepdims=True)
    mean = (onehot @ xc) / counts
    mx = jnp.max(jnp.where(onehot[:, :, None] > 0, xc[None, :, :], -1e30), axis=1)
    logits = jnp.concatenate([mx, mean], axis=-1) @ params["w_lin"] + params["b_lin"]
    return jax.nn.log_softmax(logits, axis=1)


if __name__ == "__main__":
    # Small synthetic problem: B=2 graphs of 8 nodes each.
    N_PER, B = 8, 2
    N = N_PER * B
    NFEAT, NHID, NCLASS, NLAYER = 8, 16, 4, 2

    key = jax.random.PRNGKey(0)
    k1, k2, k3, k4, k5, k6, k7 = jax.random.split(key, 7)

    x = jax.random.normal(k1, (N, NFEAT), jnp.float32)

    # Bidirectional ring inside each graph.
    src, dst = [], []
    for g in range(B):
        off = g * N_PER
        for i in range(N_PER):
            j = (i + 1) % N_PER
            src += [off + i, off + j]
            dst += [off + j, off + i]
    edge_index = jnp.array([src, dst], dtype=jnp.int32)
    edge_weight = jnp.ones((edge_index.shape[1],), jnp.float32)
    batch = jnp.repeat(jnp.arange(B, dtype=jnp.int32), N_PER)

    # Deterministic parameter init (shapes from GraphGCN.__init__ with res=True).
    params = {
        "w1": jax.random.normal(k2, (NFEAT, NHID), jnp.float32) * 0.2,
        "b1": jax.random.normal(k3, (NHID,), jnp.float32) * 0.1,
        "w2": jax.random.normal(k4, (NHID, NHID), jnp.float32) * 0.2,
        "b2": jax.random.normal(k5, (NHID,), jnp.float32) * 0.1,
        "w_lin": jax.random.normal(k6, (NHID * NLAYER * 2, NCLASS), jnp.float32) * 0.2,
        "b_lin": jax.random.normal(k7, (NCLASS,), jnp.float32) * 0.1,
    }

    # TODO(synk): F.dropout is training-time only; eval mode (identity) is implemented here.
    ref = reference_forward(params, x, edge_index, edge_weight, batch, B)

    # Primary path: fused residency kernel.
    out_fused = graph_gcn_forward(params, x, edge_index, edge_weight, batch, B)
    out_fused = jax.block_until_ready(out_fused)
    assert out_fused.shape == (B, NCLASS)
    assert bool(jnp.allclose(out_fused, ref, atol=3e-2, rtol=3e-2))

    # Fallback path: force the tiled 2-pass propagate + head (same small problem).
    out_tiled = graph_gcn_forward(params, x, edge_index, edge_weight, batch, B,
                                  residency_max_nodes=0)
    out_tiled = jax.block_until_ready(out_tiled)
    assert out_tiled.shape == (B, NCLASS)
    assert bool(jnp.allclose(out_tiled, ref, atol=3e-2, rtol=3e-2))

    print("KERNEL_OK")
</pallas_src>

<mosaic_0001>
module attributes {stable_mosaic.version = 11 : i64} {
  func.func @_fused_gcn_kernel(%arg0: i32, %arg1: memref<128x128xbf16, #tpu.memory_space<vmem>>, %arg2: memref<128x8xf32, #tpu.memory_space<vmem>>, %arg3: memref<8x16xf32, #tpu.memory_space<vmem>>, %arg4: memref<1x16xf32, #tpu.memory_space<vmem>>, %arg5: memref<16x16xf32, #tpu.memory_space<vmem>>, %arg6: memref<1x16xf32, #tpu.memory_space<vmem>>, %arg7: memref<128x32xbf16, #tpu.memory_space<vmem>>) attributes {dimension_semantics = [#tpu.dimension_semantics<arbitrary>], iteration_bounds = array<i64: 1>, scalar_prefetch = 0 : i64, scratch_operands = 0 : i64, tpu.core_type = #tpu.core_type<tc>, window_params = [{pipeline_mode = #tpu.pipeline_mode<synchronous>, transform_indices = @transform_0, window_bounds = array<i64: 128, 128>}, {pipeline_mode = #tpu.pipeline_mode<synchronous>, transform_indices = @transform_1, window_bounds = array<i64: 128, 8>}, {pipeline_mode = #tpu.pipeline_mode<synchronous>, transform_indices = @transform_2, window_bounds = array<i64: 8, 16>}, {pipeline_mode = #tpu.pipeline_mode<synchronous>, transform_indices = @transform_3, window_bounds = array<i64: 1, 16>}, {pipeline_mode = #tpu.pipeline_mode<synchronous>, transform_indices = @transform_4, window_bounds = array<i64: 16, 16>}, {pipeline_mode = #tpu.pipeline_mode<synchronous>, transform_indices = @transform_5, window_bounds = array<i64: 1, 16>}, {pipeline_mode = #tpu.pipeline_mode<synchronous>, transform_indices = @transform_6, window_bounds = array<i64: 128, 32>}]} {
    %c0 = arith.constant 0 : index
    %c0_0 = arith.constant 0 : index
    %0 = vector.load %arg1[%c0, %c0_0] : memref<128x128xbf16, #tpu.memory_space<vmem>>, vector<128x128xbf16>
    %c0_1 = arith.constant 0 : index
    %c0_2 = arith.constant 0 : index
    %1 = vector.load %arg2[%c0_1, %c0_2] : memref<128x8xf32, #tpu.memory_space<vmem>>, vector<128x8xf32>
    %2 = arith.truncf %1 : vector<128x8xf32> to vector<128x8xbf16>
    %c0_3 = arith.constant 0 : index
    %c0_4 = arith.constant 0 : index
    %3 = vector.load %arg3[%c0_3, %c0_4] : memref<8x16xf32, #tpu.memory_space<vmem>>, vector<8x16xf32>
    %4 = arith.truncf %3 : vector<8x16xf32> to vector<8x16xbf16>
    %cst = arith.constant dense<0.000000e+00> : vector<128x16xf32>
    %5 = tpu.matmul %2, %4, %cst {dimension_numbers = #tpu.dot_dimension_numbers<[1], [0], [0], [1], [0, 0, 1, 1], [], []>} : vector<128x8xbf16>, vector<8x16xbf16>, vector<128x16xf32> -> vector<128x16xf32>
    %6 = arith.truncf %5 : vector<128x16xf32> to vector<128x16xbf16>
    %cst_5 = arith.constant dense<0.000000e+00> : vector<128x16xf32>
    %7 = tpu.matmul %0, %6, %cst_5 {dimension_numbers = #tpu.dot_dimension_numbers<[1], [0], [0], [1], [0, 0, 1, 1], [], []>} : vector<128x128xbf16>, vector<128x16xbf16>, vector<128x16xf32> -> vector<128x16xf32>
    %c0_6 = arith.constant 0 : index
    %c0_7 = arith.constant 0 : index
    %8 = vector.load %arg4[%c0_6, %c0_7] : memref<1x16xf32, #tpu.memory_space<vmem>>, vector<1x16xf32>
    %9 = vector.broadcast %8 : vector<1x16xf32> to vector<128x16xf32>
    %10 = arith.addf %7, %9 : vector<128x16xf32>
    %cst_8 = arith.constant 0.000000e+00 : f32
    %11 = vector.broadcast %cst_8 : f32 to vector<128x16xf32>
    %12 = arith.maximumf %10, %11 : vector<128x16xf32>
    %13 = arith.truncf %12 : vector<128x16xf32> to vector<128x16xbf16>
    %c0_9 = arith.constant 0 : index
    %c0_10 = arith.constant 0 : index
    %14 = vector.load %arg5[%c0_9, %c0_10] : memref<16x16xf32, #tpu.memory_space<vmem>>, vector<16x16xf32>
    %15 = arith.truncf %14 : vector<16x16xf32> to vector<16x16xbf16>
    %cst_11 = arith.constant dense<0.000000e+00> : vector<128x16xf32>
    %16 = tpu.matmul %13, %15, %cst_11 {dimension_numbers = #tpu.dot_dimension_numbers<[1], [0], [0], [1], [0, 0, 1, 1], [], []>} : vector<128x16xbf16>, vector<16x16xbf16>, vector<128x16xf32> -> vector<128x16xf32>
    %17 = arith.truncf %16 : vector<128x16xf32> to vector<128x16xbf16>
    %cst_12 = arith.constant dense<0.000000e+00> : vector<128x16xf32>
    %18 = tpu.matmul %0, %17, %cst_12 {dimension_numbers = #tpu.dot_dimension_numbers<[1], [0], [0], [1], [0, 0, 1, 1], [], []>} : vector<128x128xbf16>, vector<128x16xbf16>, vector<128x16xf32> -> vector<128x16xf32>
    %c0_13 = arith.constant 0 : index
    %c0_14 = arith.constant 0 : index
    %19 = vector.load %arg6[%c0_13, %c0_14] : memref<1x16xf32, #tpu.memory_space<vmem>>, vector<1x16xf32>
    %20 = vector.broadcast %19 : vector<1x16xf32> to vector<128x16xf32>
    %21 = arith.addf %18, %20 : vector<128x16xf32>
    %cst_15 = arith.constant 0.000000e+00 : f32
    %22 = vector.broadcast %cst_15 : f32 to vector<128x16xf32>
    %23 = arith.maximumf %21, %22 : vector<128x16xf32>
    %24 = tpu.concatenate %12, %23 in 1 : vector<128x16xf32>, vector<128x16xf32> -> vector<128x32xf32>
    %25 = arith.truncf %24 : vector<128x32xf32> to vector<128x32xbf16>
    %c0_16 = arith.constant 0 : index
    %c0_17 = arith.constant 0 : index
    %26 = vector.load %arg7[%c0_16, %c0_17] : memref<128x32xbf16, #tpu.memory_space<vmem>>, vector<128x32xbf16>
    tpu.vector_store %arg7[%c0_16, %c0_17], %25 {strides = array<i32>} : memref<128x32xbf16, #tpu.memory_space<vmem>>, vector<128x32xbf16>,
    return
  }
  func.func @transform_0(%arg0: i32) -> (i32, i32) {
    %c0_i32 = arith.constant 0 : i32
    %c0_i32_0 = arith.constant 0 : i32
    %c0_i32_1 = arith.constant 0 : i32
    return %c0_i32, %c0_i32_0 : i32, i32
  }
  func.func @transform_1(%arg0: i32) -> (i32, i32) {
    %c0_i32 = arith.constant 0 : i32
    %c0_i32_0 = arith.constant 0 : i32
    %c0_i32_1 = arith.constant 0 : i32
    return %c0_i32, %c0_i32_0 : i32, i32
  }
  func.func @transform_2(%arg0: i32) -> (i32, i32) {
    %c0_i32 = arith.constant 0 : i32
    %c0_i32_0 = arith.constant 0 : i32
    %c0_i32_1 = arith.constant 0 : i32
    return %c0_i32, %c0_i32_0 : i32, i32
  }
  func.func @transform_3(%arg0: i32) -> (i32, i32) {
    %c0_i32 = arith.constant 0 : i32
    %c0_i32_0 = arith.constant 0 : i32
    %c0_i32_1 = arith.constant 0 : i32
    return %c0_i32, %c0_i32_0 : i32, i32
  }
  func.func @transform_4(%arg0: i32) -> (i32, i32) {
    %c0_i32 = arith.constant 0 : i32
    %c0_i32_0 = arith.constant 0 : i32
    %c0_i32_1 = arith.constant 0 : i32
    return %c0_i32, %c0_i32_0 : i32, i32
  }
  func.func @transform_5(%arg0: i32) -> (i32, i32) {
    %c0_i32 = arith.constant 0 : i32
    %c0_i32_0 = arith.constant 0 : i32
    %c0_i32_1 = arith.constant 0 : i32
    return %c0_i32, %c0_i32_0 : i32, i32
  }
  func.func @transform_6(%arg0: i32) -> (i32, i32) {
    %c0_i32 = arith.constant 0 : i32
    %c0_i32_0 = arith.constant 0 : i32
    %c0_i32_1 = arith.constant 0 : i32
    return %c0_i32, %c0_i32_0 : i32, i32
  }
}

</mosaic_0001>

<llo_original>
// kernel: tpu_custom_call.1
$region0: #{tpu_custom_call.1}
  #allocation0 [shape = 'u32[]', space=smem, size = 0x4, offset = 0x4, fixed_abs, tag = 'smem constant byte address 0x4 - core index']
  #allocation1 [shape = 'u32[72,128]{1,0:T(1,128)}', space=vmem, size = 0x9000, scoped, tag = 'internal scratch']
  %s0 = inlined_call_operand.vmem [shape: bf16[128,128], index: 0, kind: input, shape index: {}]
  %s1 = inlined_call_operand.vmem [shape: f32[128,8], index: 1, kind: input, shape index: {}]
  %s2 = inlined_call_operand.vmem [shape: f32[8,16], index: 2, kind: input, shape index: {}]
  %s3 = inlined_call_operand.vmem [shape: f32[1,16], index: 3, kind: input, shape index: {}]
  %s4 = inlined_call_operand.vmem [shape: f32[16,16], index: 4, kind: input, shape index: {}]
  %s5 = inlined_call_operand.vmem [shape: f32[1,16], index: 5, kind: input, shape index: {}]
  %s6 = inlined_call_operand.vmem [shape: bf16[128,32], index: 6, kind: output, shape index: {}]
  %s7 = sld [smem:[#allocation0]]
  $region34: #{tpu_custom_call.1} parent=0
    _
  %s9 = ssub.s32 1, %s7
  %s10 = scalar_select 0, %s9, %s7
  // Predicated region
  $region2: #{tpu_custom_call.1} parent=0 // pred_check
    _
  $region3: #{tpu_custom_call.1} parent=0 // pred_check_branch
    %12 = sbr.rel (0) target = $region5
  $region4: #{tpu_custom_call.1} parent=0 // pred_region
    _
  $region5: #{tpu_custom_call.1} parent=0 // pred_fallthru
    _
  // Predicated region
  $region6: #{tpu_custom_call.1} parent=0 // pred_check
    _
  $region7: #{tpu_custom_call.1} parent=0 // pred_check_branch
    %14 = sbr.rel (0) target = $region9
  $region8: #{tpu_custom_call.1} parent=0 // pred_region
    _
  $region9: #{tpu_custom_call.1} parent=0 // pred_fallthru
    _
  // Predicated region
  $region10: #{tpu_custom_call.1} parent=0 // pred_check
    _
  $region11: #{tpu_custom_call.1} parent=0 // pred_check_branch
    %16 = sbr.rel (0) target = $region13
  $region12: #{tpu_custom_call.1} parent=0 // pred_region
    _
  $region13: #{tpu_custom_call.1} parent=0 // pred_fallthru
    _
  // Predicated region
  $region14: #{tpu_custom_call.1} parent=0 // pred_check
    _
  $region15: #{tpu_custom_call.1} parent=0 // pred_check_branch
    %18 = sbr.rel (0) target = $region17
  $region16: #{tpu_custom_call.1} parent=0 // pred_region
    _
  $region17: #{tpu_custom_call.1} parent=0 // pred_fallthru
    _
  // Predicated region
  $region18: #{tpu_custom_call.1} parent=0 // pred_check
    _
  $region19: #{tpu_custom_call.1} parent=0 // pred_check_branch
    %20 = sbr.rel (0) target = $region21
  $region20: #{tpu_custom_call.1} parent=0 // pred_region
    _
  $region21: #{tpu_custom_call.1} parent=0 // pred_fallthru
    _
  // Predicated region
  $region22: #{tpu_custom_call.1} parent=0 // pred_check
    _
  $region23: #{tpu_custom_call.1} parent=0 // pred_check_branch
    %22 = sbr.rel (0) target = $region25
  $region24: #{tpu_custom_call.1} parent=0 // pred_region
    _
  $region25: #{tpu_custom_call.1} parent=0 // pred_fallthru
    _
  %v24 = vld [vmem:[%s0] sm:$0xf]
  %v25 = vld [vmem:[%s0 + $0x4] sm:$0xf]
  %v26 = vld [vmem:[%s0 + $0x8] sm:$0xf]
  %v27 = vld [vmem:[%s0 + $0xc] sm:$0xf]
  %v28 = vld [vmem:[%s0 + $0x10] sm:$0xf]
  %v29 = vld [vmem:[%s0 + $0x14] sm:$0xf]
  %v30 = vld [vmem:[%s0 + $0x18] sm:$0xf]
  %v31 = vld [vmem:[%s0 + $0x1c] sm:$0xf]
  %v32 = vld [vmem:[%s0 + $0x20] sm:$0xf]
  %v33 = vld [vmem:[%s0 + $0x24] sm:$0xf]
  %v34 = vld [vmem:[%s0 + $0x28] sm:$0xf]
  %v35 = vld [vmem:[%s0 + $0x2c] sm:$0xf]
  %v36 = vld [vmem:[%s0 + $0x30] sm:$0xf]
  %v37 = vld [vmem:[%s0 + $0x34] sm:$0xf]
  %v38 = vld [vmem:[%s0 + $0x38] sm:$0xf]
  %v39 = vld [vmem:[%s0 + $0x3c] sm:$0xf]
  %v40 = vld [vmem:[%s1] sm:$0xff]
  %v41 = vld [vmem:[%s1 + $0x8] sm:$0xff]
  %v42 = vld [vmem:[%s1 + $0x10] sm:$0xff]
  %v43 = vld [vmem:[%s1 + $0x18] sm:$0xff]
  %v44 = vld [vmem:[%s1 + $0x20] sm:$0xff]
  %v45 = vld [vmem:[%s1 + $0x28] sm:$0xff]
  %v46 = vld [vmem:[%s1 + $0x30] sm:$0xff]
  %v47 = vld [vmem:[%s1 + $0x38] sm:$0xff]
  %v48 = vld [vmem:[%s1 + $0x40] sm:$0xff]
  %v49 = vld [vmem:[%s1 + $0x48] sm:$0xff]
  %v50 = vld [vmem:[%s1 + $0x50] sm:$0xff]
  %v51 = vld [vmem:[%s1 + $0x58] sm:$0xff]
  %v52 = vld [vmem:[%s1 + $0x60] sm:$0xff]
  %v53 = vld [vmem:[%s1 + $0x68] sm:$0xff]
  %v54 = vld [vmem:[%s1 + $0x70] sm:$0xff]
  %v55 = vld [vmem:[%s1 + $0x78] sm:$0xff]
  %v56 = vpack.c.bf16 %v41, %v40
  %v57 = vpack.c.bf16 %v43, %v42
  %v58 = vpack.c.bf16 %v45, %v44
  %v59 = vpack.c.bf16 %v47, %v46
  %v60 = vpack.c.bf16 %v49, %v48
  %v61 = vpack.c.bf16 %v51, %v50
  %v62 = vpack.c.bf16 %v53, %v52
  %v63 = vpack.c.bf16 %v55, %v54
  %v64 = vld [vmem:[%s2] sm:$0xff]
  %v65 = vpack.c.bf16 %v64, %v64
  %vm66 = vcmask 64512
  %v68 = vsel %vm66, %v56, 0
  %v71 = vsel %vm66, %v57, 0
  %v74 = vsel %vm66, %v58, 0
  %v77 = vsel %vm66, %v59, 0
  %v80 = vsel %vm66, %v60, 0
  %v83 = vsel %vm66, %v61, 0
  %v86 = vsel %vm66, %v62, 0
  %v89 = vsel %vm66, %v63, 0
  %vm91 = vcmask 1043456
  %v93 = vsel %vm91, %v65, 0
  %95 = vmatpush.bf16.msra.mxu0 0
  %96 = vmatpush.bf16.msra.mxu0 0
  %97 = vmatpush.bf16.msra.mxu0 0
  %98 = vmatpush.bf16.msra.mxu0 0
  %99 = vmatpush.bf16.msra.mxu0 0
  %100 = vmatpush.bf16.msra.mxu0 0
  %101 = vmatpush.bf16.msra.mxu0 0
  %102 = vmatpush.bf16.msra.mxu0 %v93
  %103 = vmatmul.bf16.gmra.mxu0 %v68
  %v104 = vpop.f32.mrf.mxu0
  %v105 = vadd.f32 0.0, %v104
  %v106 = vpop.f32.mrf.mxu0
  %v107 = vadd.f32 0.0, %v106
  %108 = vmatmul.bf16.gmra.mxu0 %v71
  %v109 = vpop.f32.mrf.mxu0
  %v110 = vadd.f32 0.0, %v109
  %v111 = vpop.f32.mrf.mxu0
  %v112 = vadd.f32 0.0, %v111
  %113 = vmatmul.bf16.gmra.mxu0 %v74
  %v114 = vpop.f32.mrf.mxu0
  %v115 = vadd.f32 0.0, %v114
  %v116 = vpop.f32.mrf.mxu0
  %v117 = vadd.f32 0.0, %v116
  %118 = vmatmul.bf16.gmra.mxu0 %v77
  %v119 = vpop.f32.mrf.mxu0
  %v120 = vadd.f32 0.0, %v119
  %v121 = vpop.f32.mrf.mxu0
  %v122 = vadd.f32 0.0, %v121
  %123 = vmatmul.bf16.gmra.mxu0 %v80
  %v124 = vpop.f32.mrf.mxu0
  %v125 = vadd.f32 0.0, %v124
  %v126 = vpop.f32.mrf.mxu0
  %v127 = vadd.f32 0.0, %v126
  %128 = vmatmul.bf16.gmra.mxu0 %v83
  %v129 = vpop.f32.mrf.mxu0
  %v130 = vadd.f32 0.0, %v129
  %v131 = vpop.f32.mrf.mxu0
  %v132 = vadd.f32 0.0, %v131
  %133 = vmatmul.bf16.gmra.mxu0 %v86
  %v134 = vpop.f32.mrf.mxu0
  %v135 = vadd.f32 0.0, %v134
  %v136 = vpop.f32.mrf.mxu0
  %v137 = vadd.f32 0.0, %v136
  %138 = vmatmul.bf16.gmra.mxu0 %v89
  %v139 = vpop.f32.mrf.mxu0
  %v140 = vadd.f32 0.0, %v139
  %v141 = vpop.f32.mrf.mxu0
  %v142 = vadd.f32 0.0, %v141
  %143 = vdwg.mxu0
  %v144 = vpack.c.bf16 %v107, %v105
  %v145 = vpack.c.bf16 %v112, %v110
  %v146 = vpack.c.bf16 %v117, %v115
  %v147 = vpack.c.bf16 %v122, %v120
  %v148 = vpack.c.bf16 %v127, %v125
  %v149 = vpack.c.bf16 %v132, %v130
  %v150 = vpack.c.bf16 %v137, %v135
  %v151 = vpack.c.bf16 %v142, %v140
  %v152 = vld [vmem:[%s3] sm:$0x1]
  %v154 = vperm.slane %v152, 0
  %v172 = vunpack.c.l.b16 %v24
  %v173 = vunpack.c.l.b16 %v25
  %v174 = vunpack.c.l.b16 %v26
  %v175 = vunpack.c.l.b16 %v27
  %v176 = vunpack.c.l.b16 %v28
  %v177 = vunpack.c.l.b16 %v29
  %v178 = vunpack.c.l.b16 %v30
  %v179 = vunpack.c.l.b16 %v31
  %v180 = vunpack.c.l.b16 %v32
  %v181 = vunpack.c.l.b16 %v33
  %v182 = vunpack.c.l.b16 %v34
  %v183 = vunpack.c.l.b16 %v35
  %v184 = vunpack.c.l.b16 %v36
  %v185 = vunpack.c.l.b16 %v37
  %v186 = vunpack.c.l.b16 %v38
  %v187 = vunpack.c.l.b16 %v39
  %v188 = vpack.c.b16 %v173, %v172
  %v189 = vpack.c.b16 %v175, %v174
  %v190 = vpack.c.b16 %v177, %v176
  %v191 = vpack.c.b16 %v179, %v178
  %v192 = vpack.c.b16 %v181, %v180
  %v193 = vpack.c.b16 %v183, %v182
  %v194 = vpack.c.b16 %v185, %v184
  %v195 = vpack.c.b16 %v187, %v186
  %204 = vmatpush.bf16.msra.mxu0 %v151
  %205 = vmatpush.bf16.msra.mxu0 %v150
  %206 = vmatpush.bf16.msra.mxu0 %v149
  %207 = vmatpush.bf16.msra.mxu0 %v148
  %208 = vmatpush.bf16.msra.mxu0 %v147
  %209 = vmatpush.bf16.msra.mxu0 %v146
  %210 = vmatpush.bf16.msra.mxu0 %v145
  %211 = vmatpush.bf16.msra.mxu0 %v144
  %212 = vmatmul.bf16.gmra.mxu0 %v188
  %v213 = vpop.f32.mrf.mxu0
  %v214 = vadd.f32 %v154, %v213
  %v215 = vpop.f32.mrf.mxu0
  %v216 = vadd.f32 %v154, %v215
  %217 = vmatmul.bf16.gmra.mxu0 %v189
  %v218 = vpop.f32.mrf.mxu0
  %v219 = vadd.f32 %v154, %v218
  %v220 = vpop.f32.mrf.mxu0
  %v221 = vadd.f32 %v154, %v220
  %222 = vmatmul.bf16.gmra.mxu0 %v190
  %v223 = vpop.f32.mrf.mxu0
  %v224 = vadd.f32 %v154, %v223
  %v225 = vpop.f32.mrf.mxu0
  %v226 = vadd.f32 %v154, %v225
  %227 = vmatmul.bf16.gmra.mxu0 %v191
  %v228 = vpop.f32.mrf.mxu0
  %v229 = vadd.f32 %v154, %v228
  %v230 = vpop.f32.mrf.mxu0
  %v231 = vadd.f32 %v154, %v230
  %232 = vmatmul.bf16.gmra.mxu0 %v192
  %v233 = vpop.f32.mrf.mxu0
  %v234 = vadd.f32 %v154, %v233
  %v235 = vpop.f32.mrf.mxu0
  %v236 = vadd.f32 %v154, %v235
  %237 = vmatmul.bf16.gmra.mxu0 %v193
  %v238 = vpop.f32.mrf.mxu0
  %v239 = vadd.f32 %v154, %v238
  %v240 = vpop.f32.mrf.mxu0
  %v241 = vadd.f32 %v154, %v240
  %242 = vmatmul.bf16.gmra.mxu0 %v194
  %v243 = vpop.f32.mrf.mxu0
  %v244 = vadd.f32 %v154, %v243
  %v245 = vpop.f32.mrf.mxu0
  %v246 = vadd.f32 %v154, %v245
  %247 = vmatmul.bf16.gmra.mxu0 %v195
  %v248 = vpop.f32.mrf.mxu0
  %v249 = vadd.f32 %v154, %v248
  %v250 = vpop.f32.mrf.mxu0
  %v251 = vadd.f32 %v154, %v250
  %252 = vdwg.mxu0
  %v253 = vmax.f32 %v214, 0.0
  %v254 = vmax.f32 %v216, 0.0
  %v255 = vmax.f32 %v219, 0.0
  %v256 = vmax.f32 %v221, 0.0
  %v257 = vmax.f32 %v224, 0.0
  %v258 = vmax.f32 %v226, 0.0
  %v259 = vmax.f32 %v229, 0.0
  %v260 = vmax.f32 %v231, 0.0
  %v261 = vmax.f32 %v234, 0.0
  %v262 = vmax.f32 %v236, 0.0
  %v263 = vmax.f32 %v239, 0.0
  %v264 = vmax.f32 %v241, 0.0
  %v265 = vmax.f32 %v244, 0.0
  %v266 = vmax.f32 %v246, 0.0
  %v267 = vmax.f32 %v249, 0.0
  %v268 = vmax.f32 %v251, 0.0
  %v269 = vpack.c.bf16 %v254, %v253
  %v270 = vpack.c.bf16 %v256, %v255
  %v271 = vpack.c.bf16 %v258, %v257
  %v272 = vpack.c.bf16 %v260, %v259
  %v273 = vpack.c.bf16 %v262, %v261
  %v274 = vpack.c.bf16 %v264, %v263
  %v275 = vpack.c.bf16 %v266, %v265
  %v276 = vpack.c.bf16 %v268, %v267
  %v277 = vld [vmem:[%s4] sm:$0xff]
  %v278 = vld [vmem:[%s4 + $0x8] sm:$0xff]
  %v279 = vpack.c.bf16 %v278, %v277
  %vm280 = vcmask 130048
  %v282 = vsel %vm280, %v269, 0
  %v285 = vsel %vm280, %v270, 0
  %v288 = vsel %vm280, %v271, 0
  %v291 = vsel %vm280, %v272, 0
  %v294 = vsel %vm280, %v273, 0
  %v297 = vsel %vm280, %v274, 0
  %v300 = vsel %vm280, %v275, 0
  %v303 = vsel %vm280, %v276, 0
  %305 = vmatpush.bf16.msra.mxu0 0
  %306 = vmatpush.bf16.msra.mxu0 0
  %307 = vmatpush.bf16.msra.mxu0 0
  %308 = vmatpush.bf16.msra.mxu0 0
  %309 = vmatpush.bf16.msra.mxu0 0
  %310 = vmatpush.bf16.msra.mxu0 0
  %311 = vmatpush.bf16.msra.mxu0 0
  %312 = vmatpush.bf16.msra.mxu0 %v279
  %313 = vmatmul.bf16.gmra.mxu0 %v282
  %v314 = vpop.f32.mrf.mxu0
  %v315 = vadd.f32 0.0, %v314
  %v316 = vpop.f32.mrf.mxu0
  %v317 = vadd.f32 0.0, %v316
  %318 = vmatmul.bf16.gmra.mxu0 %v285
  %v319 = vpop.f32.mrf.mxu0
  %v320 = vadd.f32 0.0, %v319
  %v321 = vpop.f32.mrf.mxu0
  %v322 = vadd.f32 0.0, %v321
  %323 = vmatmul.bf16.gmra.mxu0 %v288
  %v324 = vpop.f32.mrf.mxu0
  %v325 = vadd.f32 0.0, %v324
  %v326 = vpop.f32.mrf.mxu0
  %v327 = vadd.f32 0.0, %v326
  %328 = vmatmul.bf16.gmra.mxu0 %v291
  %v329 = vpop.f32.mrf.mxu0
  %v330 = vadd.f32 0.0, %v329
  %v331 = vpop.f32.mrf.mxu0
  %v332 = vadd.f32 0.0, %v331
  %333 = vmatmul.bf16.gmra.mxu0 %v294
  %v334 = vpop.f32.mrf.mxu0
  %v335 = vadd.f32 0.0, %v334
  %v336 = vpop.f32.mrf.mxu0
  %v337 = vadd.f32 0.0, %v336
  %338 = vmatmul.bf16.gmra.mxu0 %v297
  %v339 = vpop.f32.mrf.mxu0
  %v340 = vadd.f32 0.0, %v339
  %v341 = vpop.f32.mrf.mxu0
  %v342 = vadd.f32 0.0, %v341
  %343 = vmatmul.bf16.gmra.mxu0 %v300
  %v344 = vpop.f32.mrf.mxu0
  %v345 = vadd.f32 0.0, %v344
  %v346 = vpop.f32.mrf.mxu0
  %v347 = vadd.f32 0.0, %v346
  %348 = vmatmul.bf16.gmra.mxu0 %v303
  %v349 = vpop.f32.mrf.mxu0
  %v350 = vadd.f32 0.0, %v349
  %v351 = vpop.f32.mrf.mxu0
  %v352 = vadd.f32 0.0, %v351
  %353 = vdwg.mxu0
  %v354 = vpack.c.bf16 %v317, %v315
  %v355 = vpack.c.bf16 %v322, %v320
  %v356 = vpack.c.bf16 %v327, %v325
  %v357 = vpack.c.bf16 %v332, %v330
  %v358 = vpack.c.bf16 %v337, %v335
  %v359 = vpack.c.bf16 %v342, %v340
  %v360 = vpack.c.bf16 %v347, %v345
  %v361 = vpack.c.bf16 %v352, %v350
  %v362 = vld [vmem:[%s5] sm:$0x1]
  %v364 = vperm.slane %v362, 0
  %366 = vmatpush.bf16.msra.mxu0 %v361
  %367 = vmatpush.bf16.msra.mxu0 %v360
  %368 = vmatpush.bf16.msra.mxu0 %v359
  %369 = vmatpush.bf16.msra.mxu0 %v358
  %370 = vmatpush.bf16.msra.mxu0 %v357
  %371 = vmatpush.bf16.msra.mxu0 %v356
  %372 = vmatpush.bf16.msra.mxu0 %v355
  %373 = vmatpush.bf16.msra.mxu0 %v354
  %374 = vmatmul.bf16.gmra.mxu0 %v188
  %v375 = vpop.f32.mrf.mxu0
  %v376 = vadd.f32 %v364, %v375
  %v377 = vpop.f32.mrf.mxu0
  %v378 = vadd.f32 %v364, %v377
  %379 = vmatmul.bf16.gmra.mxu0 %v189
  %v380 = vpop.f32.mrf.mxu0
  %v381 = vadd.f32 %v364, %v380
  %v382 = vpop.f32.mrf.mxu0
  %v383 = vadd.f32 %v364, %v382
  %384 = vmatmul.bf16.gmra.mxu0 %v190
  %v385 = vpop.f32.mrf.mxu0
  %v386 = vadd.f32 %v364, %v385
  %v387 = vpop.f32.mrf.mxu0
  %v388 = vadd.f32 %v364, %v387
  %389 = vmatmul.bf16.gmra.mxu0 %v191
  %v390 = vpop.f32.mrf.mxu0
  %v391 = vadd.f32 %v364, %v390
  %v392 = vpop.f32.mrf.mxu0
  %v393 = vadd.f32 %v364, %v392
  %394 = vmatmul.bf16.gmra.mxu0 %v192
  %v395 = vpop.f32.mrf.mxu0
  %v396 = vadd.f32 %v364, %v395
  %v397 = vpop.f32.mrf.mxu0
  %v398 = vadd.f32 %v364, %v397
  %399 = vmatmul.bf16.gmra.mxu0 %v193
  %v400 = vpop.f32.mrf.mxu0
  %v401 = vadd.f32 %v364, %v400
  %v402 = vpop.f32.mrf.mxu0
  %v403 = vadd.f32 %v364, %v402
  %404 = vmatmul.bf16.gmra.mxu0 %v194
  %v405 = vpop.f32.mrf.mxu0
  %v406 = vadd.f32 %v364, %v405
  %v407 = vpop.f32.mrf.mxu0
  %v408 = vadd.f32 %v364, %v407
  %409 = vmatmul.bf16.gmra.mxu0 %v195
  %v410 = vpop.f32.mrf.mxu0
  %v411 = vadd.f32 %v364, %v410
  %v412 = vpop.f32.mrf.mxu0
  %v413 = vadd.f32 %v364, %v412
  %414 = vdwg.mxu0
  %v415 = vmax.f32 %v376, 0.0
  %v416 = vmax.f32 %v378, 0.0
  %v417 = vmax.f32 %v381, 0.0
  %v418 = vmax.f32 %v383, 0.0
  %v419 = vmax.f32 %v386, 0.0
  %v420 = vmax.f32 %v388, 0.0
  %v421 = vmax.f32 %v391, 0.0
  %v422 = vmax.f32 %v393, 0.0
  %v423 = vmax.f32 %v396, 0.0
  %v424 = vmax.f32 %v398, 0.0
  %v425 = vmax.f32 %v401, 0.0
  %v426 = vmax.f32 %v403, 0.0
  %v427 = vmax.f32 %v406, 0.0
  %v428 = vmax.f32 %v408, 0.0
  %v429 = vmax.f32 %v411, 0.0
  %v430 = vmax.f32 %v413, 0.0
  %447 = vrot.lane.b32.xlu0 %v415, 16
  %v448 = vpop.permute.xlu0 %447
  %449 = vrot.lane.b32.xlu0 %v416, 16
  %v450 = vpop.permute.xlu0 %449
  %451 = vrot.lane.b32.xlu0 %v417, 16
  %v452 = vpop.permute.xlu0 %451
  %453 = vrot.lane.b32.xlu0 %v418, 16
  %v454 = vpop.permute.xlu0 %453
  %455 = vrot.lane.b32.xlu0 %v419, 16
  %v456 = vpop.permute.xlu0 %455
  %457 = vrot.lane.b32.xlu0 %v420, 16
  %v458 = vpop.permute.xlu0 %457
  %459 = vrot.lane.b32.xlu0 %v421, 16
  %v460 = vpop.permute.xlu0 %459
  %461 = vrot.lane.b32.xlu0 %v422, 16
  %v462 = vpop.permute.xlu0 %461
  %463 = vrot.lane.b32.xlu0 %v423, 16
  %v464 = vpop.permute.xlu0 %463
  %465 = vrot.lane.b32.xlu0 %v424, 16
  %v466 = vpop.permute.xlu0 %465
  %467 = vrot.lane.b32.xlu0 %v425, 16
  %v468 = vpop.permute.xlu0 %467
  %469 = vrot.lane.b32.xlu0 %v426, 16
  %v470 = vpop.permute.xlu0 %469
  %471 = vrot.lane.b32.xlu0 %v427, 16
  %v472 = vpop.permute.xlu0 %471
  %473 = vrot.lane.b32.xlu0 %v428, 16
  %v474 = vpop.permute.xlu0 %473
  %475 = vrot.lane.b32.xlu0 %v429, 16
  %v476 = vpop.permute.xlu0 %475
  %477 = vrot.lane.b32.xlu0 %v430, 16
  %v478 = vpop.permute.xlu0 %477
  %v495 = vsel %vm280, %v253, %v448
  %v496 = vsel %vm280, %v254, %v450
  %v497 = vsel %vm280, %v255, %v452
  %v498 = vsel %vm280, %v256, %v454
  %v499 = vsel %vm280, %v257, %v456
  %v500 = vsel %vm280, %v258, %v458
  %v501 = vsel %vm280, %v259, %v460
  %v502 = vsel %vm280, %v260, %v462
  %v503 = vsel %vm280, %v261, %v464
  %v504 = vsel %vm280, %v262, %v466
  %v505 = vsel %vm280, %v263, %v468
  %v506 = vsel %vm280, %v264, %v470
  %v507 = vsel %vm280, %v265, %v472
  %v508 = vsel %vm280, %v266, %v474
  %v509 = vsel %vm280, %v267, %v476
  %v510 = vsel %vm280, %v268, %v478
  %v511 = vpack.c.bf16 %v495, %v495
  %v512 = vpack.c.bf16 %v496, %v496
  %v513 = vpack.c.bf16 %v497, %v497
  %v514 = vpack.c.bf16 %v498, %v498
  %v515 = vpack.c.bf16 %v499, %v499
  %v516 = vpack.c.bf16 %v500, %v500
  %v517 = vpack.c.bf16 %v501, %v501
  %v518 = vpack.c.bf16 %v502, %v502
  %v519 = vpack.c.bf16 %v503, %v503
  %v520 = vpack.c.bf16 %v504, %v504
  %v521 = vpack.c.bf16 %v505, %v505
  %v522 = vpack.c.bf16 %v506, %v506
  %v523 = vpack.c.bf16 %v507, %v507
  %v524 = vpack.c.bf16 %v508, %v508
  %v525 = vpack.c.bf16 %v509, %v509
  %v526 = vpack.c.bf16 %v510, %v510
  %vm527 = vcmask 257024
  %528 = vst.msk [vmem:[%s6] sm:$0xf] %vm527, %v511
  %529 = vst.msk [vmem:[%s6 + $0x4] sm:$0xf] %vm527, %v512
  %530 = vst.msk [vmem:[%s6 + $0x8] sm:$0xf] %vm527, %v513
  %531 = vst.msk [vmem:[%s6 + $0xc] sm:$0xf] %vm527, %v514
  %532 = vst.msk [vmem:[%s6 + $0x10] sm:$0xf] %vm527, %v515
  %533 = vst.msk [vmem:[%s6 + $0x14] sm:$0xf] %vm527, %v516
  %534 = vst.msk [vmem:[%s6 + $0x18] sm:$0xf] %vm527, %v517
  %535 = vst.msk [vmem:[%s6 + $0x1c] sm:$0xf] %vm527, %v518
  %536 = vst.msk [vmem:[%s6 + $0x20] sm:$0xf] %vm527, %v519
  %537 = vst.msk [vmem:[%s6 + $0x24] sm:$0xf] %vm527, %v520
  %538 = vst.msk [vmem:[%s6 + $0x28] sm:$0xf] %vm527, %v521
  %539 = vst.msk [vmem:[%s6 + $0x2c] sm:$0xf] %vm527, %v522
  %540 = vst.msk [vmem:[%s6 + $0x30] sm:$0xf] %vm527, %v523
  %541 = vst.msk [vmem:[%s6 + $0x34] sm:$0xf] %vm527, %v524
  %542 = vst.msk [vmem:[%s6 + $0x38] sm:$0xf] %vm527, %v525
  %543 = vst.msk [vmem:[%s6 + $0x3c] sm:$0xf] %vm527, %v526
  // Predicated region
  $region26: #{tpu_custom_call.1} parent=0 // pred_check
    _
  $region27: #{tpu_custom_call.1} parent=0 // pred_check_branch
    %545 = sbr.rel (0) target = $region29
  $region28: #{tpu_custom_call.1} parent=0 // pred_region
    _
  $region29: #{tpu_custom_call.1} parent=0 // pred_fallthru
    _
  // Predicated region
  $region30: #{tpu_custom_call.1} parent=0 // pred_check
    _
  $region31: #{tpu_custom_call.1} parent=0 // pred_check_branch
    %547 = sbr.rel (0) target = $region33
  $region32: #{tpu_custom_call.1} parent=0 // pred_region
    _
  $region33: #{tpu_custom_call.1} parent=0 // pred_fallthru
    _

</llo_original>
